<compile_context>
chip_gen: v7x
topology: tpu7x:2x2x1
jax: 0.10.0
libtpu: 0.0.40
codegen_flags: <defaults>
</compile_context>

<pallas_src>
import functools

import jax
import jax.numpy as jnp
from jax.experimental import pallas as pl
from jax.experimental.pallas import tpu as pltpu


def _round_up(x, m):
    return (x + m - 1) // m * m


def _size_selector_kernel(x_ref, w1_ref, p_ref, vecp_ref, w_ab_ref, b_ab_ref,
                          v_ref, acc_ref, *, hw, chunk):
    k = pl.program_id(0)

    @pl.when(k == 0)
    def _init():
        acc_ref[...] = jnp.zeros_like(acc_ref)

    xv = x_ref[...].astype(jnp.float32)                      # (R, chunk)
    if hw % chunk != 0:
        # Ragged tail: OOB lanes of the (partial) last block hold unspecified data.
        # Use a select (not a multiply) so NaN/Inf garbage cannot propagate.
        valid = jnp.minimum(hw - k * chunk, chunk)
        lane = jax.lax.broadcasted_iota(jnp.int32, xv.shape, 1)
        xv = jnp.where(lane < valid, xv, 0.0)

    # Partial spatial sum for this H*W chunk; rows are the flattened (b, c) pairs.
    acc_ref[...] += jnp.sum(xv, axis=-1, keepdims=True)

    @pl.when(k == pl.num_programs(0) - 1)
    def _epilogue():
        # acc holds sum_{h,w} x[b,c,h,w] per row.  w1 is w_emb tiled over the batch
        # and pre-scaled by 1/(H*W); p is the (B, B*C) grouping matrix, so
        #   z = p @ (acc * w1)  ==  mean_pool(x) @ w_emb
        contrib = acc_ref[...] * w1_ref[...]                               # (R, I)
        z = jnp.dot(p_ref[...], contrib,
                    preferred_element_type=jnp.float32) + vecp_ref[0:1, :]  # (B, I)

        # BatchNorm1d with batch statistics (training mode, biased variance).
        mu = jnp.mean(z, axis=0, keepdims=True)
        var = jnp.mean((z - mu) ** 2, axis=0, keepdims=True)
        zn = (z - mu) * jax.lax.rsqrt(var + 1e-5)
        o1 = jnp.maximum(zn * vecp_ref[1:2, :] + vecp_ref[2:3, :], 0.0)     # (B, I)

        # Fused selector heads (single matmul) + softmax over the 2*O logits.
        logits = jnp.dot(o1, w_ab_ref[...],
                         preferred_element_type=jnp.float32) + b_ab_ref[...]
        logits = logits - jnp.max(logits, axis=1, keepdims=True)
        e = jnp.exp(logits)
        v_ref[...] = e / jnp.sum(e, axis=1, keepdims=True)


def size_selector_forward(x, params, *, tile_bytes=4 * 1024 * 1024):
    """x: (B, C, H, W) float32 (NCHW, as in PyTorch). Returns (a, b), each (B,1,1,1)."""
    B, C, H, W = x.shape
    HW = H * W
    R = B * C

    w_emb, b_emb, gamma, beta, w_a, b_a, w_b, b_b = params
    I = w_emb.shape[1]
    O = w_a.shape[1]

    # Contiguous NCHW -> (B*C, H*W) is a metadata-only reshape (no HBM copy).
    x_flat = x.reshape(R, HW)

    # Lane chunk sized by a per-buffer byte target (the pipeline double-buffers it).
    lanes = max(128, (tile_bytes // (x.dtype.itemsize * R)) // 128 * 128)
    chunk = min(lanes, _round_up(HW, 128))
    n_k = -(-HW // chunk)
    # TODO(synk): for very large B*C add a row-block grid axis (marked "parallel")
    # and split the reduction + epilogue into two pallas_calls so the v7x megacore
    # can share the reduction; a single resident row slab is fine at these sizes.

    # w_emb tiled across the batch and pre-scaled by 1/(H*W); grouping matrix
    # p[b, b*C + c] = 1 maps the pooled (B*C,1) column back to (B, I) activations
    # without any in-kernel sublane<->lane reshape.
    w1 = jnp.tile(w_emb, (B, 1)) / HW                                   # (R, I)
    p_mat = (jnp.arange(R)[None, :] // C == jnp.arange(B)[:, None]
             ).astype(jnp.float32)                                      # (B, R)
    vec_params = jnp.stack([b_emb, gamma, beta], axis=0)                # (3, I) packed
    w_ab = jnp.concatenate([w_a, w_b], axis=1)                          # (I, 2*O)
    b_ab = jnp.concatenate([b_a, b_b], axis=0).reshape(1, 2 * O)

    # Explicit scoped-VMEM limit derived from the actual footprint (2x the
    # double-buffered x tile + residents), clamped below v7x's 64 MiB physical.
    def padded(r, c, itemsize=4):
        return _round_up(max(r, 1), 8) * _round_up(max(c, 1), 128) * itemsize

    x_buf = padded(R, chunk, x.dtype.itemsize)
    resident = (padded(R, I) + padded(B, R) + padded(3, I) + padded(I, 2 * O)
                + padded(1, 2 * O) + padded(B, 2 * O) + padded(R, 1))
    vmem_limit = max(16 << 20, min(2 * x_buf + 2 * resident + (4 << 20), 48 << 20))

    def resident_spec(shape):
        # Constant index_map -> DMA'd once, stays resident across grid steps.
        return pl.BlockSpec(shape, lambda k: (0, 0))

    kernel = functools.partial(_size_selector_kernel, hw=HW, chunk=chunk)

    v = pl.pallas_call(
        kernel,
        out_shape=jax.ShapeDtypeStruct((B, 2 * O), jnp.float32),
        grid_spec=pltpu.PrefetchScalarGridSpec(
            num_scalar_prefetch=0,
            grid=(n_k,),
            in_specs=[
                pl.BlockSpec((R, chunk), lambda k: (0, k)),             # x (pipelined)
                resident_spec((R, I)),                                  # w1
                resident_spec((B, R)),                                  # grouping matrix
                resident_spec((3, I)),                                  # b_emb/gamma/beta
                resident_spec((I, 2 * O)),                              # fused head weights
                resident_spec((1, 2 * O)),                              # fused head bias
            ],
            out_specs=pl.BlockSpec((B, 2 * O), lambda k: (0, 0)),
            scratch_shapes=[pltpu.VMEM((R, 1), jnp.float32)],
        ),
        compiler_params=pltpu.CompilerParams(
            dimension_semantics=("arbitrary",),
            vmem_limit_bytes=int(vmem_limit)),
    )(x_flat, w1, p_mat, vec_params, w_ab, b_ab)

    a = v[:, 0].reshape(B, 1, 1, 1)
    b = v[:, 1].reshape(B, 1, 1, 1)
    return a, b


def _reference_forward(x, params):
    """Pure-JAX reference mirroring the PyTorch module (training-mode BN)."""
    w_emb, b_emb, gamma, beta, w_a, b_a, w_b, b_b = params
    vec = x.mean(-1).mean(-1)
    z = vec @ w_emb + b_emb
    mu = z.mean(0, keepdims=True)
    var = ((z - mu) ** 2).mean(0, keepdims=True)
    o1 = jnp.maximum((z - mu) / jnp.sqrt(var + 1e-5) * gamma + beta, 0.0)
    a = o1 @ w_a + b_a
    b = o1 @ w_b + b_b
    v = jax.nn.softmax(jnp.concatenate([a, b], axis=1), axis=1)
    return v[:, 0].reshape(-1, 1, 1, 1), v[:, 1].reshape(-1, 1, 1, 1)


def init_params(key, in_channels, intermediate_channels, out_channels):
    ks = jax.random.split(key, 8)
    # Linear weights stored as (in, out) == transposed PyTorch layout.
    w_emb = jax.random.normal(ks[0], (in_channels, intermediate_channels), jnp.float32) * 0.2
    b_emb = jax.random.normal(ks[1], (intermediate_channels,), jnp.float32) * 0.1
    gamma = 1.0 + 0.1 * jax.random.normal(ks[2], (intermediate_channels,), jnp.float32)
    beta = 0.1 * jax.random.normal(ks[3], (intermediate_channels,), jnp.float32)
    w_a = jax.random.normal(ks[4], (intermediate_channels, out_channels), jnp.float32) * 0.2
    b_a = jax.random.normal(ks[5], (out_channels,), jnp.float32) * 0.1
    w_b = jax.random.normal(ks[6], (intermediate_channels, out_channels), jnp.float32) * 0.2
    b_b = jax.random.normal(ks[7], (out_channels,), jnp.float32) * 0.1
    return (w_emb, b_emb, gamma, beta, w_a, b_a, w_b, b_b)


def _check(x, params, **kw):
    a, b = size_selector_forward(x, params, **kw)
    jax.block_until_ready((a, b))
    a_ref, b_ref = _reference_forward(x, params)
    assert a.shape == a_ref.shape and b.shape == b_ref.shape
    assert jnp.allclose(a, a_ref, atol=1e-5), (a, a_ref)
    assert jnp.allclose(b, b_ref, atol=1e-5), (b, b_ref)


if __name__ == "__main__":
    key = jax.random.PRNGKey(0)
    k_x, k_x2, k_p = jax.random.split(key, 3)

    B, C, H, W = 2, 4, 16, 16          # in_channels = 4
    INTER, OUT = 32, 1                 # intermediate_channels = 32, out_channels = 1

    params = init_params(k_p, C, INTER, OUT)

    # Main shape: single large chunk (H*W divides the chunk).
    x = jax.random.normal(k_x, (B, C, H, W), jnp.float32)
    _check(x, params)

    # Multi-step accumulation path (tiny tile_bytes forces chunk=128, n_k=2).
    _check(x, params, tile_bytes=4096)

    # Ragged H*W tail: exercises the in-kernel lane mask on the partial last block.
    x2 = jax.random.normal(k_x2, (B, C, 13, 11), jnp.float32)
    _check(x2, params, tile_bytes=4096)

    print("KERNEL_OK")
</pallas_src>

<mosaic_0001>
module attributes {stable_mosaic.version = 11 : i64} {
  func.func @_size_selector_kernel(%arg0: i32, %arg1: memref<8x256xf32, #tpu.memory_space<vmem>>, %arg2: memref<8x32xf32, #tpu.memory_space<vmem>>, %arg3: memref<2x8xf32, #tpu.memory_space<vmem>>, %arg4: memref<3x32xf32, #tpu.memory_space<vmem>>, %arg5: memref<32x2xf32, #tpu.memory_space<vmem>>, %arg6: memref<1x2xf32, #tpu.memory_space<vmem>>, %arg7: memref<2x2xf32, #tpu.memory_space<vmem>>, %arg8: memref<8x1xf32, #tpu.memory_space<vmem>>) attributes {dimension_semantics = [#tpu.dimension_semantics<arbitrary>], iteration_bounds = array<i64: 1>, scalar_prefetch = 0 : i64, scratch_operands = 1 : i64, tpu.core_type = #tpu.core_type<tc>, window_params = [{transform_indices = @transform_0, window_bounds = array<i64: 8, 256>}, {pipeline_mode = #tpu.pipeline_mode<synchronous>, transform_indices = @transform_1, window_bounds = array<i64: 8, 32>}, {pipeline_mode = #tpu.pipeline_mode<synchronous>, transform_indices = @transform_2, window_bounds = array<i64: 2, 8>}, {pipeline_mode = #tpu.pipeline_mode<synchronous>, transform_indices = @transform_3, window_bounds = array<i64: 3, 32>}, {pipeline_mode = #tpu.pipeline_mode<synchronous>, transform_indices = @transform_4, window_bounds = array<i64: 32, 2>}, {pipeline_mode = #tpu.pipeline_mode<synchronous>, transform_indices = @transform_5, window_bounds = array<i64: 1, 2>}, {pipeline_mode = #tpu.pipeline_mode<synchronous>, transform_indices = @transform_6, window_bounds = array<i64: 2, 2>}]} {
    %c0_i32 = arith.constant 0 : i32
    %0 = arith.cmpi eq, %arg0, %c0_i32 : i32
    %1 = arith.extui %0 : i1 to i32
    %c0_i32_0 = arith.constant 0 : i32
    %2 = arith.cmpi ne, %1, %c0_i32_0 : i32
    scf.if %2 {
      %cst_8 = arith.constant 0.000000e+00 : f32
      %12 = vector.broadcast %cst_8 : f32 to vector<8x1xf32>
      %c0_9 = arith.constant 0 : index
      %c0_10 = arith.constant 0 : index
      %13 = vector.load %arg8[%c0_9, %c0_10] : memref<8x1xf32, #tpu.memory_space<vmem>>, vector<8x1xf32>
      tpu.vector_store %arg8[%c0_9, %c0_10], %12 {strides = array<i32>} : memref<8x1xf32, #tpu.memory_space<vmem>>, vector<8x1xf32>,
    } else {
    }
    %c0 = arith.constant 0 : index
    %c0_1 = arith.constant 0 : index
    %3 = vector.load %arg1[%c0, %c0_1] : memref<8x256xf32, #tpu.memory_space<vmem>>, vector<8x256xf32>
    %c0_2 = arith.constant 0 : index
    %c0_3 = arith.constant 0 : index
    %4 = vector.load %arg8[%c0_2, %c0_3] : memref<8x1xf32, #tpu.memory_space<vmem>>, vector<8x1xf32>
    %cst = arith.constant dense<0.000000e+00> : vector<8xf32>
    %5 = vector.multi_reduction <add>, %3, %cst [1] : vector<8x256xf32> to vector<8xf32>
    %6 = vector.shape_cast %5 : vector<8xf32> to vector<8x1xf32>
    %7 = arith.addf %4, %6 : vector<8x1xf32>
    %c0_4 = arith.constant 0 : index
    %c0_5 = arith.constant 0 : index
    %8 = vector.load %arg8[%c0_4, %c0_5] : memref<8x1xf32, #tpu.memory_space<vmem>>, vector<8x1xf32>
    tpu.vector_store %arg8[%c0_4, %c0_5], %7 {strides = array<i32>} : memref<8x1xf32, #tpu.memory_space<vmem>>, vector<8x1xf32>,
    %c0_i32_6 = arith.constant 0 : i32
    %9 = arith.cmpi eq, %arg0, %c0_i32_6 : i32
    %10 = arith.extui %9 : i1 to i32
    %c0_i32_7 = arith.constant 0 : i32
    %11 = arith.cmpi ne, %10, %c0_i32_7 : i32
    scf.if %11 {
      %c0_8 = arith.constant 0 : index
      %c0_9 = arith.constant 0 : index
      %12 = vector.load %arg8[%c0_8, %c0_9] : memref<8x1xf32, #tpu.memory_space<vmem>>, vector<8x1xf32>
      %c0_10 = arith.constant 0 : index
      %c0_11 = arith.constant 0 : index
      %13 = vector.load %arg2[%c0_10, %c0_11] : memref<8x32xf32, #tpu.memory_space<vmem>>, vector<8x32xf32>
      %14 = vector.broadcast %12 : vector<8x1xf32> to vector<8x32xf32>
      %15 = arith.mulf %14, %13 : vector<8x32xf32>
      %c0_12 = arith.constant 0 : index
      %c0_13 = arith.constant 0 : index
      %16 = vector.load %arg3[%c0_12, %c0_13] : memref<2x8xf32, #tpu.memory_space<vmem>>, vector<2x8xf32>
      %cst_14 = arith.constant dense<0.000000e+00> : vector<2x32xf32>
      %17 = tpu.matmul %16, %15, %cst_14 {dimension_numbers = #tpu.dot_dimension_numbers<[1], [0], [0], [1], [0, 0, 1, 1], [], []>} : vector<2x8xf32>, vector<8x32xf32>, vector<2x32xf32> -> vector<2x32xf32>
      %c0_15 = arith.constant 0 : index
      %c0_16 = arith.constant 0 : index
      %18 = vector.load %arg4[%c0_15, %c0_16] : memref<3x32xf32, #tpu.memory_space<vmem>>, vector<1x32xf32>
      %19 = vector.broadcast %18 : vector<1x32xf32> to vector<2x32xf32>
      %20 = arith.addf %17, %19 : vector<2x32xf32>
      %cst_17 = arith.constant dense<0.000000e+00> : vector<32xf32>
      %21 = vector.multi_reduction <add>, %20, %cst_17 [0] : vector<2x32xf32> to vector<32xf32>
      %22 = vector.shape_cast %21 : vector<32xf32> to vector<1x32xf32>
      %cst_18 = arith.constant 2.000000e+00 : f32
      %23 = vector.broadcast %cst_18 : f32 to vector<1x32xf32>
      %24 = arith.divf %22, %23 : vector<1x32xf32>
      %25 = vector.broadcast %24 : vector<1x32xf32> to vector<2x32xf32>
      %26 = arith.subf %20, %25 : vector<2x32xf32>
      %27 = arith.mulf %26, %26 : vector<2x32xf32>
      %cst_19 = arith.constant dense<0.000000e+00> : vector<32xf32>
      %28 = vector.multi_reduction <add>, %27, %cst_19 [0] : vector<2x32xf32> to vector<32xf32>
      %29 = vector.shape_cast %28 : vector<32xf32> to vector<1x32xf32>
      %cst_20 = arith.constant 2.000000e+00 : f32
      %30 = vector.broadcast %cst_20 : f32 to vector<1x32xf32>
      %31 = arith.divf %29, %30 : vector<1x32xf32>
      %32 = vector.broadcast %24 : vector<1x32xf32> to vector<2x32xf32>
      %33 = arith.subf %20, %32 : vector<2x32xf32>
      %cst_21 = arith.constant 9.99999974E-6 : f32
      %34 = vector.broadcast %cst_21 : f32 to vector<1x32xf32>
      %35 = arith.addf %31, %34 : vector<1x32xf32>
      %36 = math.rsqrt %35 : vector<1x32xf32>
      %37 = vector.broadcast %36 : vector<1x32xf32> to vector<2x32xf32>
      %38 = arith.mulf %33, %37 : vector<2x32xf32>
      %c1 = arith.constant 1 : index
      %c0_22 = arith.constant 0 : index
      %39 = vector.load %arg4[%c1, %c0_22] : memref<3x32xf32, #tpu.memory_space<vmem>>, vector<1x32xf32>
      %40 = vector.broadcast %39 : vector<1x32xf32> to vector<2x32xf32>
      %41 = arith.mulf %38, %40 : vector<2x32xf32>
      %c2 = arith.constant 2 : index
      %c0_23 = arith.constant 0 : index
      %42 = vector.load %arg4[%c2, %c0_23] : memref<3x32xf32, #tpu.memory_space<vmem>>, vector<1x32xf32>
      %43 = vector.broadcast %42 : vector<1x32xf32> to vector<2x32xf32>
      %44 = arith.addf %41, %43 : vector<2x32xf32>
      %cst_24 = arith.constant 0.000000e+00 : f32
      %45 = vector.broadcast %cst_24 : f32 to vector<2x32xf32>
      %46 = arith.maximumf %44, %45 : vector<2x32xf32>
      %c0_25 = arith.constant 0 : index
      %c0_26 = arith.constant 0 : index
      %47 = vector.load %arg5[%c0_25, %c0_26] : memref<32x2xf32, #tpu.memory_space<vmem>>, vector<32x2xf32>
      %cst_27 = arith.constant dense<0.000000e+00> : vector<2x2xf32>
      %48 = tpu.matmul %46, %47, %cst_27 {dimension_numbers = #tpu.dot_dimension_numbers<[1], [0], [0], [1], [0, 0, 1, 1], [], []>} : vector<2x32xf32>, vector<32x2xf32>, vector<2x2xf32> -> vector<2x2xf32>
      %c0_28 = arith.constant 0 : index
      %c0_29 = arith.constant 0 : index
      %49 = vector.load %arg6[%c0_28, %c0_29] : memref<1x2xf32, #tpu.memory_space<vmem>>, vector<1x2xf32>
      %50 = vector.broadcast %49 : vector<1x2xf32> to vector<2x2xf32>
      %51 = arith.addf %48, %50 : vector<2x2xf32>
      %cst_30 = arith.constant dense<0xFF800000> : vector<2xf32>
      %52 = vector.multi_reduction <maximumf>, %51, %cst_30 [1] : vector<2x2xf32> to vector<2xf32>
      %53 = vector.shape_cast %52 : vector<2xf32> to vector<2x1xf32>
      %54 = vector.broadcast %53 : vector<2x1xf32> to vector<2x2xf32>
      %55 = arith.subf %51, %54 : vector<2x2xf32>
      %56 = math.exp %55 : vector<2x2xf32>
      %cst_31 = arith.constant dense<0.000000e+00> : vector<2xf32>
      %57 = vector.multi_reduction <add>, %56, %cst_31 [1] : vector<2x2xf32> to vector<2xf32>
      %58 = vector.shape_cast %57 : vector<2xf32> to vector<2x1xf32>
      %59 = vector.broadcast %58 : vector<2x1xf32> to vector<2x2xf32>
      %60 = arith.divf %56, %59 : vector<2x2xf32>
      %c0_32 = arith.constant 0 : index
      %c0_33 = arith.constant 0 : index
      %61 = vector.load %arg7[%c0_32, %c0_33] : memref<2x2xf32, #tpu.memory_space<vmem>>, vector<2x2xf32>
      tpu.vector_store %arg7[%c0_32, %c0_33], %60 {strides = array<i32>} : memref<2x2xf32, #tpu.memory_space<vmem>>, vector<2x2xf32>,
    } else {
    }
    return
  }
  func.func @transform_0(%arg0: i32) -> (i32, i32) {
    %c0_i32 = arith.constant 0 : i32
    %c0_i32_0 = arith.constant 0 : i32
    return %c0_i32, %arg0 : i32, i32
  }
  func.func @transform_1(%arg0: i32) -> (i32, i32) {
    %c0_i32 = arith.constant 0 : i32
    %c0_i32_0 = arith.constant 0 : i32
    %c0_i32_1 = arith.constant 0 : i32
    return %c0_i32, %c0_i32_0 : i32, i32
  }
  func.func @transform_2(%arg0: i32) -> (i32, i32) {
    %c0_i32 = arith.constant 0 : i32
    %c0_i32_0 = arith.constant 0 : i32
    %c0_i32_1 = arith.constant 0 : i32
    return %c0_i32, %c0_i32_0 : i32, i32
  }
  func.func @transform_3(%arg0: i32) -> (i32, i32) {
    %c0_i32 = arith.constant 0 : i32
    %c0_i32_0 = arith.constant 0 : i32
    %c0_i32_1 = arith.constant 0 : i32
    return %c0_i32, %c0_i32_0 : i32, i32
  }
  func.func @transform_4(%arg0: i32) -> (i32, i32) {
    %c0_i32 = arith.constant 0 : i32
    %c0_i32_0 = arith.constant 0 : i32
    %c0_i32_1 = arith.constant 0 : i32
    return %c0_i32, %c0_i32_0 : i32, i32
  }
  func.func @transform_5(%arg0: i32) -> (i32, i32) {
    %c0_i32 = arith.constant 0 : i32
    %c0_i32_0 = arith.constant 0 : i32
    %c0_i32_1 = arith.constant 0 : i32
    return %c0_i32, %c0_i32_0 : i32, i32
  }
  func.func @transform_6(%arg0: i32) -> (i32, i32) {
    %c0_i32 = arith.constant 0 : i32
    %c0_i32_0 = arith.constant 0 : i32
    %c0_i32_1 = arith.constant 0 : i32
    return %c0_i32, %c0_i32_0 : i32, i32
  }
}

</mosaic_0001>

<llo_original>
// kernel: tpu_custom_call.1
$region0: #{tpu_custom_call.1}
  #allocation0 [shape = 'u32[]', space=smem, size = 0x4, offset = 0x4, fixed_abs, tag = 'smem constant byte address 0x4 - core index']
  #allocation1 [shape = 'u32[144,128]{1,0:T(1,128)}', space=vmem, size = 0x12000, scoped, tag = 'internal scratch']
  #allocation2 [shape = 'f32[8,1]{1,0:T(8,128)}', space=vmem, size = 0x1000, scoped, tag = 'scratch operand']
  %s0 = inlined_call_operand.vmem [shape: f32[8,256], index: 0, kind: input, shape index: {}]
  %s1 = inlined_call_operand.vmem [shape: f32[8,32], index: 1, kind: input, shape index: {}]
  %s2 = inlined_call_operand.vmem [shape: f32[2,8], index: 2, kind: input, shape index: {}]
  %s3 = inlined_call_operand.vmem [shape: f32[3,32], index: 3, kind: input, shape index: {}]
  %s4 = inlined_call_operand.vmem [shape: f32[32,2], index: 4, kind: input, shape index: {}]
  %s5 = inlined_call_operand.vmem [shape: f32[1,2], index: 5, kind: input, shape index: {}]
  %s6 = inlined_call_operand.hbm [shape: f32[2,2], index: 6, kind: output, shape index: {}]
  %s7 = sld [smem:[#allocation0]]
  $region42: #{tpu_custom_call.1} parent=0
    _
  %s9 = ssub.s32 1, %s7
  %s10 = scalar_select 0, %s9, %s7
  $region1: #{tpu_custom_call.1} parent=0
    #allocation3 [shape = 'u8[1024]{0}', space=vmem, size = 0x400, scoped, tag = 'output window, operand 0, single buffered']
    #allocation4 [shape = 's32[1]{0}', space=sflag, size = 0x4, scoped, tag = 'scoped memory for tpu_custom_call.1']
    %11 = vsyncpa [#allocation4], 0
    // Predicated region
    $region2: #{tpu_custom_call.1} parent=1 // pred_check
      _
    $region3: #{tpu_custom_call.1} parent=1 // pred_check_branch
      %13 = sbr.rel (0) target = $region5
    $region4: #{tpu_custom_call.1} parent=1 // pred_region
      _
    $region5: #{tpu_custom_call.1} parent=1 // pred_fallthru
      _
    // Predicated region
    $region6: #{tpu_custom_call.1} parent=1 // pred_check
      _
    $region7: #{tpu_custom_call.1} parent=1 // pred_check_branch
      %15 = sbr.rel (0) target = $region9
    $region8: #{tpu_custom_call.1} parent=1 // pred_region
      _
    $region9: #{tpu_custom_call.1} parent=1 // pred_fallthru
      _
    // Predicated region
    $region10: #{tpu_custom_call.1} parent=1 // pred_check
      _
    $region11: #{tpu_custom_call.1} parent=1 // pred_check_branch
      %17 = sbr.rel (0) target = $region13
    $region12: #{tpu_custom_call.1} parent=1 // pred_region
      _
    $region13: #{tpu_custom_call.1} parent=1 // pred_fallthru
      _
    // Predicated region
    $region14: #{tpu_custom_call.1} parent=1 // pred_check
      _
    $region15: #{tpu_custom_call.1} parent=1 // pred_check_branch
      %19 = sbr.rel (0) target = $region17
    $region16: #{tpu_custom_call.1} parent=1 // pred_region
      _
    $region17: #{tpu_custom_call.1} parent=1 // pred_fallthru
      _
    // Predicated region
    $region18: #{tpu_custom_call.1} parent=1 // pred_check
      _
    $region19: #{tpu_custom_call.1} parent=1 // pred_check_branch
      %21 = sbr.rel (0) target = $region21
    $region20: #{tpu_custom_call.1} parent=1 // pred_region
      _
    $region21: #{tpu_custom_call.1} parent=1 // pred_fallthru
      _
    // Predicated region
    $region22: #{tpu_custom_call.1} parent=1 // pred_check
      _
    $region23: #{tpu_custom_call.1} parent=1 // pred_check_branch
      %23 = sbr.rel (0) target = $region25
    $region24: #{tpu_custom_call.1} parent=1 // pred_region
      _
    $region25: #{tpu_custom_call.1} parent=1 // pred_fallthru
      _
    %p24 = scmp.eq.s32.totalorder 0, 0
    // Predicated region
    $region26: #{tpu_custom_call.1} parent=1 // pred_check
      %p25 = pneg %p24
    $region27: #{tpu_custom_call.1} parent=1 // pred_check_branch
      %27 = sbr.rel (%p25) target = $region29
    $region28: #{tpu_custom_call.1} parent=1 // pred_region
      %vm28 = vcmask 7168
      %29 = vst.msk [vmem:[#allocation2] sm:$0xff] %vm28, 0.0
    $region29: #{tpu_custom_call.1} parent=1 // pred_fallthru
      _
    %v30 = vld [vmem:[%s0] sm:$0xff]
    %v31 = vld [vmem:[%s0 + $0x8] sm:$0xff]
    %v32 = vld [vmem:[#allocation2] sm:$0xff]
    %v33 = vadd.f32 %v30, %v31
    %34 = vadd.xlane.f32.xlu0 %v33
    %v35 = vpop.xlane.xlu0 %34
    %v36 = vadd.f32 %v32, %v35
    %vm37 = vcmask 7168
    %38 = vst.msk [vmem:[#allocation2] sm:$0xff] %vm37, %v36
    // Predicated region
    $region30: #{tpu_custom_call.1} parent=1 // pred_check
      %p39 = pneg %p24
    $region31: #{tpu_custom_call.1} parent=1 // pred_check_branch
      %41 = sbr.rel (%p39) target = $region33
    $region32: #{tpu_custom_call.1} parent=1 // pred_region
      %v42 = vld [vmem:[#allocation2] sm:$0xff]
      %v43 = vld [vmem:[%s1] sm:$0xff]
      %45 = vset.pattern.permute.xlu0 0
      %46 = vperm.xlu0 %45, %v42
      %v47 = vpop.permute.xlu0 %46
      %v49 = vmul.f32 %v47, %v43
      %v50 = vld [vmem:[%s2] sm:$0x3]
      %v51 = vld [vmem:[%s3] sm:$0x1]
      %v52 = vlaneseq
      %v53 = vshrl.u32 %v52, 7
      %v54 = vsub.s32 0, %v53
      %v55 = vrot.slane %v51, %v54
      %vm56 = vcmask 64512
      %v58 = vsel %vm56, %v50, 0
      %60 = vmatprep.subr.mxu0 0.0
      %61 = vmatpush1.msra.mxu0 %v49
      %62 = vmatprep.subr.mxu0 0.0
      %63 = vmatpush1.msra.mxu0 0.0
      %64 = vmatprep.subr.mxu0 0.0
      %65 = vmatpush1.msra.mxu0 0.0
      %66 = vmatprep.subr.mxu0 0.0
      %67 = vmatpush1.msra.mxu0 0.0
      %68 = vmatprep.subr.mxu0 0.0
      %69 = vmatpush1.msra.mxu0 0.0
      %70 = vmatprep.subr.mxu0 0.0
      %71 = vmatpush1.msra.mxu0 0.0
      %72 = vmatprep.subr.mxu0 0.0
      %73 = vmatpush1.msra.mxu0 0.0
      %74 = vmatprep.subr.mxu0 0.0
      %75 = vmatpush1.msra.mxu0 0.0
      %76 = vmatprep.subr.mxu0 0.0
      %77 = vmatpush1.msra.mxu0 0.0
      %78 = vmatprep.subr.mxu0 0.0
      %79 = vmatpush1.msra.mxu0 0.0
      %80 = vmatprep.subr.mxu0 0.0
      %81 = vmatpush1.msra.mxu0 0.0
      %82 = vmatprep.subr.mxu0 0.0
      %83 = vmatpush1.msra.mxu0 0.0
      %84 = vmatprep.subr.mxu0 0.0
      %85 = vmatpush1.msra.mxu0 0.0
      %86 = vmatprep.subr.mxu0 0.0
      %87 = vmatpush1.msra.mxu0 0.0
      %88 = vmatprep.subr.mxu0 0.0
      %89 = vmatpush1.msra.mxu0 0.0
      %90 = vmatprep.subr.mxu0 0.0
      %91 = vmatpush1.msra.mxu0 0.0
      %92 = vmatprep.subr.mxu0 0.0
      %93 = vmatpush1.msra.mxu0 0.0
      %94 = vmatprep.subr.mxu0 0.0
      %95 = vmatpush1.msra.mxu0 0.0
      %96 = vmatprep.subr.mxu0 0.0
      %97 = vmatpush1.msra.mxu0 0.0
      %98 = vmatprep.subr.mxu0 0.0
      %99 = vmatpush1.msra.mxu0 0.0
      %100 = vmatprep.subr.mxu0 0.0
      %101 = vmatpush1.msra.mxu0 0.0
      %102 = vmatprep.subr.mxu0 0.0
      %103 = vmatpush1.msra.mxu0 0.0
      %104 = vmatprep.subr.mxu0 0.0
      %105 = vmatpush1.msra.mxu0 0.0
      %106 = vmatprep.subr.mxu0 0.0
      %107 = vmatpush1.msra.mxu0 0.0
      %108 = vmatprep.subr.mxu0 0.0
      %109 = vmatpush1.msra.mxu0 0.0
      %110 = vmatprep.subr.mxu0 0.0
      %111 = vmatpush1.msra.mxu0 0.0
      %112 = vmatprep.subr.mxu0 0.0
      %113 = vmatpush1.msra.mxu0 0.0
      %114 = vmatprep.subr.mxu0 0.0
      %115 = vmatpush1.msra.mxu0 0.0
      %116 = vmatprep.subr.mxu0 0.0
      %117 = vmatpush1.msra.mxu0 0.0
      %118 = vmatprep.subr.mxu0 0.0
      %119 = vmatpush1.msra.mxu0 0.0
      %120 = vmatprep.subr.mxu0 0.0
      %121 = vmatpush1.msra.mxu0 0.0
      %122 = vmatprep.subr.mxu0 0.0
      %123 = vmatpush1.msra.mxu0 0.0
      %124 = vmatprep.mubr.f32.mxu0 0.0
      %125 = vmatmul.mubr.f32.gmra.mrb[0].mxu0 %v58
      %v126 = vpop.f32.mrb[0].mxu0
      %v127 = vadd.f32 %v55, %v126
      %v128 = vpop.f32.mrb[0].mxu0
      %129 = vdwg.mxu0
      %vm130 = vcmask 254976
      %v131 = vsel %vm130, %v127, 0.0
      %v132 = vrot.slane %v131, 4
      %v133 = vadd.f32 %v131, %v132
      %v134 = vrot.slane %v133, 2
      %v135 = vadd.f32 %v133, %v134
      %v136 = vrot.slane %v135, 1
      %v137 = vadd.f32 %v135, %v136
      %v138 = vrcp.pop 2.0
      %v139 = vmul.f32 %v137, %v138
      %v140 = vsub.f32 %v127, %v139
      %v141 = vmul.f32 %v140, %v140
      %v142 = vsel %vm130, %v141, 0.0
      %v143 = vrot.slane %v142, 4
      %v144 = vadd.f32 %v142, %v143
      %v145 = vrot.slane %v144, 2
      %v146 = vadd.f32 %v144, %v145
      %v147 = vrot.slane %v146, 1
      %v148 = vadd.f32 %v146, %v147
      %v149 = vmul.f32 %v148, %v138
      %v150 = vadd.f32 %v149, 1e-05
      %v151 = vrsqrt.pop %v150
      %v152 = vmul.f32 %v140, %v151
      %v153 = vld [vmem:[%s3 + $0x1] sm:$0x1]
      %v154 = vlaneseq
      %v155 = vshrl.u32 %v154, 7
      %v156 = vsub.s32 0, %v155
      %v157 = vrot.slane %v153, %v156
      %v158 = vmul.f32 %v152, %v157
      %v159 = vld [vmem:[%s3 + $0x2] sm:$0x1]
      %v160 = vlaneseq
      %v161 = vshrl.u32 %v160, 7
      %v162 = vsub.s32 0, %v161
      %v163 = vrot.slane %v159, %v162
      %v164 = vadd.f32 %v158, %v163
      %v165 = vmax.f32 %v164, 0.0
      %v166 = vld [vmem:[%s4] sm:$0xff]
      %v167 = vld [vmem:[%s4 + $0x8] sm:$0xff]
      %v168 = vld [vmem:[%s4 + $0x10] sm:$0xff]
      %v169 = vld [vmem:[%s4 + $0x18] sm:$0xff]
      %v170 = vld [vmem:[%s5] sm:$0x1]
      %v172 = vlaneseq
      %v173 = vshrl.u32 %v172, 7
      %v174 = vsub.s32 0, %v173
      %v175 = vrot.slane %v170, %v174
      %vm177 = vcmask 261120
      %v179 = vsel %vm177, %v165, 0
      %181 = vmatprep.subr.mxu0 0.0
      %182 = vmatpush1.msra.mxu0 %v166
      %183 = vmatprep.subr.mxu0 0.0
      %184 = vmatpush1.msra.mxu0 %v167
      %185 = vmatprep.subr.mxu0 0.0
      %186 = vmatpush1.msra.mxu0 %v168
      %187 = vmatprep.subr.mxu0 0.0
      %188 = vmatpush1.msra.mxu0 %v169
      %189 = vmatprep.subr.mxu0 0.0
      %190 = vmatpush1.msra.mxu0 0.0
      %191 = vmatprep.subr.mxu0 0.0
      %192 = vmatpush1.msra.mxu0 0.0
      %193 = vmatprep.subr.mxu0 0.0
      %194 = vmatpush1.msra.mxu0 0.0
      %195 = vmatprep.subr.mxu0 0.0
      %196 = vmatpush1.msra.mxu0 0.0
      %197 = vmatprep.subr.mxu0 0.0
      %198 = vmatpush1.msra.mxu0 0.0
      %199 = vmatprep.subr.mxu0 0.0
      %200 = vmatpush1.msra.mxu0 0.0
      %201 = vmatprep.subr.mxu0 0.0
      %202 = vmatpush1.msra.mxu0 0.0
      %203 = vmatprep.subr.mxu0 0.0
      %204 = vmatpush1.msra.mxu0 0.0
      %205 = vmatprep.subr.mxu0 0.0
      %206 = vmatpush1.msra.mxu0 0.0
      %207 = vmatprep.subr.mxu0 0.0
      %208 = vmatpush1.msra.mxu0 0.0
      %209 = vmatprep.subr.mxu0 0.0
      %210 = vmatpush1.msra.mxu0 0.0
      %211 = vmatprep.subr.mxu0 0.0
      %212 = vmatpush1.msra.mxu0 0.0
      %213 = vmatprep.subr.mxu0 0.0
      %214 = vmatpush1.msra.mxu0 0.0
      %215 = vmatprep.subr.mxu0 0.0
      %216 = vmatpush1.msra.mxu0 0.0
      %217 = vmatprep.subr.mxu0 0.0
      %218 = vmatpush1.msra.mxu0 0.0
      %219 = vmatprep.subr.mxu0 0.0
      %220 = vmatpush1.msra.mxu0 0.0
      %221 = vmatprep.subr.mxu0 0.0
      %222 = vmatpush1.msra.mxu0 0.0
      %223 = vmatprep.subr.mxu0 0.0
      %224 = vmatpush1.msra.mxu0 0.0
      %225 = vmatprep.subr.mxu0 0.0
      %226 = vmatpush1.msra.mxu0 0.0
      %227 = vmatprep.subr.mxu0 0.0
      %228 = vmatpush1.msra.mxu0 0.0
      %229 = vmatprep.subr.mxu0 0.0
      %230 = vmatpush1.msra.mxu0 0.0
      %231 = vmatprep.subr.mxu0 0.0
      %232 = vmatpush1.msra.mxu0 0.0
      %233 = vmatprep.subr.mxu0 0.0
      %234 = vmatpush1.msra.mxu0 0.0
      %235 = vmatprep.subr.mxu0 0.0
      %236 = vmatpush1.msra.mxu0 0.0
      %237 = vmatprep.subr.mxu0 0.0
      %238 = vmatpush1.msra.mxu0 0.0
      %239 = vmatprep.subr.mxu0 0.0
      %240 = vmatpush1.msra.mxu0 0.0
      %241 = vmatprep.subr.mxu0 0.0
      %242 = vmatpush1.msra.mxu0 0.0
      %243 = vmatprep.subr.mxu0 0.0
      %244 = vmatpush1.msra.mxu0 0.0
      %245 = vmatprep.mubr.f32.mxu0 0.0
      %246 = vmatmul.mubr.f32.gmra.mrb[0].mxu0 %v179
      %v247 = vpop.f32.mrb[0].mxu0
      %v248 = vadd.f32 %v175, %v247
      %v249 = vpop.f32.mrb[0].mxu0
      %250 = vdwg.mxu0
      %vm251 = vcmask 9216
      %v252 = vsel %vm251, %v248, -inf
      %253 = vmax.xlane.f32.xlu0 %v252
      %v254 = vpop.xlane.xlu0 %253
      %v255 = vsub.f32 %v248, %v254
      %v256 = vmul.f32 %v255, 1.442695
      %v257 = vpow.pop %v256
      %v258 = vsel %vm251, %v257, 0.0
      %259 = vadd.xlane.f32.xlu0 %v258
      %v260 = vpop.xlane.xlu0 %259
      %v261 = vrcp.pop %v260
      %v262 = vmul.f32 %v257, %v261
      %263 = vst.msk [vmem:[#allocation3] sm:$0x3] %vm251, %v262
    $region33: #{tpu_custom_call.1} parent=1 // pred_fallthru
      _
    // Predicated region
    $region34: #{tpu_custom_call.1} parent=1 // pred_check
      _
    $region35: #{tpu_custom_call.1} parent=1 // pred_check_branch
      %265 = sbr.rel (0) target = $region37
    $region36: #{tpu_custom_call.1} parent=1 // pred_region
      %s267 = ssub.s32 32, 32
      %268 = vsyncadd [#allocation4], %s267
      %s270 = sshll.u32 [#allocation3], 4
      %s271 = int_to_ptr.vmem [resolvable:$true] %s270
      %273 = dma.vmem_to_hbm [thread:$0]  %s271, 32, %s6, [#allocation4]
    $region37: #{tpu_custom_call.1} parent=1 // pred_fallthru
      _
    // Predicated region
    $region38: #{tpu_custom_call.1} parent=1 // pred_check
      _
    $region39: #{tpu_custom_call.1} parent=1 // pred_check_branch
      %275 = sbr.rel (0) target = $region41
    $region40: #{tpu_custom_call.1} parent=1 // pred_region
      %276 = dma.done [#allocation4], 32
    $region41: #{tpu_custom_call.1} parent=1 // pred_fallthru
      _
    %277 = vsyncpa [#allocation4], 1

</llo_original>
